<compile_context>
chip_gen: v7x
topology: tpu7x:2x2x1
jax: 0.10.0
libtpu: 0.0.40
codegen_flags: <defaults>
</compile_context>

<pallas_src>
import functools

import jax
import jax.numpy as jnp
from jax.experimental import pallas as pl
from jax.experimental.pallas import tpu as pltpu

I = 40
DIM_U1 = len(range(0, I, 2))   # 20
DIM_U2 = len(range(1, I, 2))   # 20
HIDDEN = (16, 32, 32, 32, 16)  # Linear stack: 20->16->32->32->32->16->20
DIMS = (DIM_U1,) + HIDDEN + (DIM_U2,)
N_LAYERS = len(DIMS) - 1       # 6
WPAD = 32                      # max layer width; slab padding


def _mlp_kernel(w_ref, b_ref, x_ref, o_ref):
    """w_ref: (N_LAYERS, WPAD, WPAD) bf16 slab of transposed weights (out, in), zero padded.
    b_ref: (N_LAYERS, WPAD, 1) f32 slab of biases, zero padded.
    x_ref: (tile, DIM_U1) f32 input tile in its native row-major layout.
    o_ref: (tile, DIM_U2) f32 output tile."""
    xb = x_ref[...].astype(jnp.bfloat16)                       # (tile, 20)

    # Layer 1: contract the feature (minor) dim of both operands so the
    # activation lands batch-on-lanes ((16, tile)) with no explicit transpose
    # of the big input tile (same contraction pattern as q @ k^T).
    w0 = w_ref[0, :DIMS[1], :DIMS[0]]                          # (16, 20) bf16
    y = jax.lax.dot_general(w0, xb, (((1,), (1,)), ((), ())),
                            preferred_element_type=jnp.float32)
    h = jnp.maximum(y + b_ref[0, :DIMS[1], :], 0.0).astype(jnp.bfloat16)

    # Hidden layers 2..5: batch-on-lanes, bf16 inter-layer activations.
    for li in range(1, N_LAYERS - 1):
        in_d, out_d = DIMS[li], DIMS[li + 1]
        y = jnp.dot(w_ref[li, :out_d, :in_d], h,
                    preferred_element_type=jnp.float32)        # (out_d, tile)
        h = jnp.maximum(y + b_ref[li, :out_d, :], 0.0).astype(jnp.bfloat16)

    # Last layer (no ReLU): compute at the zero-padded width WPAD=32 (slab
    # rows 20..31 are zero) so the flip back to batch-on-sublanes is an
    # aligned (32, tile) -> (tile, 32) f32 transpose, then slice to 20 lanes.
    li = N_LAYERS - 1
    z = jnp.dot(w_ref[li, :WPAD, :DIMS[li]], h,
                preferred_element_type=jnp.float32)            # (32, tile)
    z = z + b_ref[li, :WPAD, :]
    o_ref[...] = z.T[:, :DIM_U2].astype(o_ref.dtype)


def init_params(key):
    """Deterministic init mimicking PyTorch nn.Linear default (U[-1/sqrt(fan_in), +])."""
    params = []
    for i in range(N_LAYERS):
        fan_in, fan_out = DIMS[i], DIMS[i + 1]
        key, kw, kb = jax.random.split(key, 3)
        bound = 1.0 / jnp.sqrt(jnp.float32(fan_in))
        w = jax.random.uniform(kw, (fan_in, fan_out), jnp.float32, -bound, bound)
        b = jax.random.uniform(kb, (1, fan_out), jnp.float32, -bound, bound)
        params.append((w, b))
    return params


def _pack_params(params):
    """Pack per-layer (in,out) weights / (1,out) biases into zero-padded slabs.
    Weights are transposed to (out, in) and cast to bf16 for the MXU."""
    wslab = jnp.zeros((N_LAYERS, WPAD, WPAD), jnp.bfloat16)
    bslab = jnp.zeros((N_LAYERS, WPAD, 1), jnp.float32)
    for i, (w, b) in enumerate(params):
        wt = w.T.astype(jnp.bfloat16)                          # (out, in)
        out_d, in_d = wt.shape
        wslab = wslab.at[i, :out_d, :in_d].set(wt)
        bslab = bslab.at[i, :out_d, 0].set(b.reshape(-1).astype(jnp.float32))
    return wslab, bslab


def _round_up(a, m):
    return (a + m - 1) // m * m


@functools.partial(jax.jit, static_argnames=("tile_b",))
def uncertainty_net(x, params, tile_b=8192):
    """x: (n, DIM_U1) f32 -> (n, DIM_U2) f32.  tile_b: max batch rows per grid step."""
    n, d_in = x.shape
    assert d_in == DIM_U1
    assert tile_b > 0 and tile_b % 128 == 0

    wslab, bslab = _pack_params(params)

    # Batch tile: as large as tile_b, but capped at ~n/8 (rounded up to 128) so
    # big batches keep >= ~8 grid steps for the two v7x TensorCores; never
    # below 128.  The ragged last block is masked by Pallas; this is safe
    # because every output row depends only on its own input row (do NOT add
    # cross-row reductions without revisiting this).
    cap = _round_up(max(pl.cdiv(n, 8), 1), 128)
    tile = max(min(tile_b, cap), 128)
    grid = pl.cdiv(n, tile)

    # VMEM budget: the (tile, 20) I/O blocks are lane-padded to 128 in VMEM
    # (tile*512 B each, double-buffered = 4 buffers), intermediates / the
    # transposed output slab add ~tile*1.5 KiB.  1.5x headroom, clamped to
    # [32, 56] MiB so it also fits v7x's 64 MiB physical VMEM.
    est = 4 * tile * 512 + tile * 1536 + (1 << 20)
    vmem_limit = int(min(max(3 * est // 2, 32 << 20), 56 << 20))

    return pl.pallas_call(
        _mlp_kernel,
        out_shape=jax.ShapeDtypeStruct((n, DIM_U2), jnp.float32),
        grid_spec=pltpu.PrefetchScalarGridSpec(
            num_scalar_prefetch=0,
            grid=(grid,),
            in_specs=[
                # Parameter slabs: constant index_map -> fetched once, reused.
                pl.BlockSpec((N_LAYERS, WPAD, WPAD), lambda i: (0, 0, 0)),
                pl.BlockSpec((N_LAYERS, WPAD, 1), lambda i: (0, 0, 0)),
                # Batch tile in the native (n, 20) layout (no HBM transpose).
                pl.BlockSpec((tile, DIM_U1), lambda i: (i, 0)),
            ],
            out_specs=pl.BlockSpec((tile, DIM_U2), lambda i: (i, 0)),
        ),
        compiler_params=pltpu.CompilerParams(
            dimension_semantics=("parallel",),
            vmem_limit_bytes=vmem_limit,
        ),
    )(wslab, bslab, x)


def uncertainty_net_ref(x, params):
    h = x
    for idx, (w, b) in enumerate(params):
        h = h @ w + b
        if idx < len(params) - 1:
            h = jnp.maximum(h, 0.0)
    return h


if __name__ == "__main__":
    key = jax.random.PRNGKey(0)
    k_param, k_x1, k_x2 = jax.random.split(key, 3)
    params = init_params(k_param)

    # Small batch (single, ragged block).
    x1 = jax.random.normal(k_x1, (8, DIM_U1), jnp.float32)
    out1 = jax.block_until_ready(uncertainty_net(x1, params))
    ref1 = uncertainty_net_ref(x1, params)
    assert out1.shape == (8, DIM_U2), out1.shape
    # bf16 matmul inputs / intermediates -> loosened tolerance vs f32 reference.
    assert jnp.allclose(out1, ref1, atol=3e-2, rtol=3e-2), \
        float(jnp.max(jnp.abs(out1 - ref1)))

    # Multi-step grid + ragged tail path (tile=128 -> grid=2).
    x2 = jax.random.normal(k_x2, (200, DIM_U1), jnp.float32)
    out2 = jax.block_until_ready(uncertainty_net(x2, params, tile_b=128))
    ref2 = uncertainty_net_ref(x2, params)
    assert out2.shape == (200, DIM_U2), out2.shape
    assert jnp.allclose(out2, ref2, atol=3e-2, rtol=3e-2), \
        float(jnp.max(jnp.abs(out2 - ref2)))

    print("KERNEL_OK")
</pallas_src>

<mosaic_0001>
module attributes {stable_mosaic.version = 11 : i64} {
  func.func @_mlp_kernel(%arg0: i32, %arg1: memref<6x32x32xbf16, #tpu.memory_space<vmem>>, %arg2: memref<6x32x1xf32, #tpu.memory_space<vmem>>, %arg3: memref<128x20xf32, #tpu.memory_space<vmem>>, %arg4: memref<128x20xf32, #tpu.memory_space<vmem>>) attributes {dimension_semantics = [#tpu.dimension_semantics<parallel>], iteration_bounds = array<i64: 1>, scalar_prefetch = 0 : i64, scratch_operands = 0 : i64, tpu.core_type = #tpu.core_type<tc>, window_params = [{pipeline_mode = #tpu.pipeline_mode<synchronous>, transform_indices = @transform_0, window_bounds = array<i64: 6, 32, 32>}, {pipeline_mode = #tpu.pipeline_mode<synchronous>, transform_indices = @transform_1, window_bounds = array<i64: 6, 32, 1>}, {transform_indices = @transform_2, window_bounds = array<i64: 128, 20>}, {transform_indices = @transform_3, window_bounds = array<i64: 128, 20>}]} {
    %c0 = arith.constant 0 : index
    %c0_0 = arith.constant 0 : index
    %0 = vector.load %arg3[%c0, %c0_0] : memref<128x20xf32, #tpu.memory_space<vmem>>, vector<128x20xf32>
    %1 = arith.truncf %0 : vector<128x20xf32> to vector<128x20xbf16>
    %c0_1 = arith.constant 0 : index
    %c0_2 = arith.constant 0 : index
    %c0_3 = arith.constant 0 : index
    %2 = vector.load %arg1[%c0_1, %c0_2, %c0_3] : memref<6x32x32xbf16, #tpu.memory_space<vmem>>, vector<1x16x20xbf16>
    %3 = vector.shape_cast %2 : vector<1x16x20xbf16> to vector<16x20xbf16>
    %cst = arith.constant dense<0.000000e+00> : vector<16x128xf32>
    %4 = tpu.matmul %3, %1, %cst {dimension_numbers = #tpu.dot_dimension_numbers<[1], [1], [0], [0], [0, 0, 1, 0], [], []>} : vector<16x20xbf16>, vector<128x20xbf16>, vector<16x128xf32> -> vector<16x128xf32>
    %c0_4 = arith.constant 0 : index
    %c0_5 = arith.constant 0 : index
    %c0_6 = arith.constant 0 : index
    %5 = vector.load %arg2[%c0_4, %c0_5, %c0_6] : memref<6x32x1xf32, #tpu.memory_space<vmem>>, vector<1x16x1xf32>
    %6 = vector.shape_cast %5 : vector<1x16x1xf32> to vector<16x1xf32>
    %7 = vector.broadcast %6 : vector<16x1xf32> to vector<16x128xf32>
    %8 = arith.addf %4, %7 : vector<16x128xf32>
    %cst_7 = arith.constant 0.000000e+00 : f32
    %9 = vector.broadcast %cst_7 : f32 to vector<16x128xf32>
    %10 = arith.maximumf %8, %9 : vector<16x128xf32>
    %11 = arith.truncf %10 : vector<16x128xf32> to vector<16x128xbf16>
    %c1 = arith.constant 1 : index
    %c0_8 = arith.constant 0 : index
    %c0_9 = arith.constant 0 : index
    %12 = vector.load %arg1[%c1, %c0_8, %c0_9] : memref<6x32x32xbf16, #tpu.memory_space<vmem>>, vector<1x32x16xbf16>
    %13 = vector.shape_cast %12 : vector<1x32x16xbf16> to vector<32x16xbf16>
    %cst_10 = arith.constant dense<0.000000e+00> : vector<32x128xf32>
    %14 = tpu.matmul %13, %11, %cst_10 {dimension_numbers = #tpu.dot_dimension_numbers<[1], [0], [0], [1], [0, 0, 1, 1], [], []>} : vector<32x16xbf16>, vector<16x128xbf16>, vector<32x128xf32> -> vector<32x128xf32>
    %c1_11 = arith.constant 1 : index
    %c0_12 = arith.constant 0 : index
    %c0_13 = arith.constant 0 : index
    %15 = vector.load %arg2[%c1_11, %c0_12, %c0_13] : memref<6x32x1xf32, #tpu.memory_space<vmem>>, vector<1x32x1xf32>
    %16 = vector.shape_cast %15 : vector<1x32x1xf32> to vector<32x1xf32>
    %17 = vector.broadcast %16 : vector<32x1xf32> to vector<32x128xf32>
    %18 = arith.addf %14, %17 : vector<32x128xf32>
    %cst_14 = arith.constant 0.000000e+00 : f32
    %19 = vector.broadcast %cst_14 : f32 to vector<32x128xf32>
    %20 = arith.maximumf %18, %19 : vector<32x128xf32>
    %21 = arith.truncf %20 : vector<32x128xf32> to vector<32x128xbf16>
    %c2 = arith.constant 2 : index
    %c0_15 = arith.constant 0 : index
    %c0_16 = arith.constant 0 : index
    %22 = vector.load %arg1[%c2, %c0_15, %c0_16] : memref<6x32x32xbf16, #tpu.memory_space<vmem>>, vector<1x32x32xbf16>
    %23 = vector.shape_cast %22 : vector<1x32x32xbf16> to vector<32x32xbf16>
    %cst_17 = arith.constant dense<0.000000e+00> : vector<32x128xf32>
    %24 = tpu.matmul %23, %21, %cst_17 {dimension_numbers = #tpu.dot_dimension_numbers<[1], [0], [0], [1], [0, 0, 1, 1], [], []>} : vector<32x32xbf16>, vector<32x128xbf16>, vector<32x128xf32> -> vector<32x128xf32>
    %c2_18 = arith.constant 2 : index
    %c0_19 = arith.constant 0 : index
    %c0_20 = arith.constant 0 : index
    %25 = vector.load %arg2[%c2_18, %c0_19, %c0_20] : memref<6x32x1xf32, #tpu.memory_space<vmem>>, vector<1x32x1xf32>
    %26 = vector.shape_cast %25 : vector<1x32x1xf32> to vector<32x1xf32>
    %27 = vector.broadcast %26 : vector<32x1xf32> to vector<32x128xf32>
    %28 = arith.addf %24, %27 : vector<32x128xf32>
    %cst_21 = arith.constant 0.000000e+00 : f32
    %29 = vector.broadcast %cst_21 : f32 to vector<32x128xf32>
    %30 = arith.maximumf %28, %29 : vector<32x128xf32>
    %31 = arith.truncf %30 : vector<32x128xf32> to vector<32x128xbf16>
    %c3 = arith.constant 3 : index
    %c0_22 = arith.constant 0 : index
    %c0_23 = arith.constant 0 : index
    %32 = vector.load %arg1[%c3, %c0_22, %c0_23] : memref<6x32x32xbf16, #tpu.memory_space<vmem>>, vector<1x32x32xbf16>
    %33 = vector.shape_cast %32 : vector<1x32x32xbf16> to vector<32x32xbf16>
    %cst_24 = arith.constant dense<0.000000e+00> : vector<32x128xf32>
    %34 = tpu.matmul %33, %31, %cst_24 {dimension_numbers = #tpu.dot_dimension_numbers<[1], [0], [0], [1], [0, 0, 1, 1], [], []>} : vector<32x32xbf16>, vector<32x128xbf16>, vector<32x128xf32> -> vector<32x128xf32>
    %c3_25 = arith.constant 3 : index
    %c0_26 = arith.constant 0 : index
    %c0_27 = arith.constant 0 : index
    %35 = vector.load %arg2[%c3_25, %c0_26, %c0_27] : memref<6x32x1xf32, #tpu.memory_space<vmem>>, vector<1x32x1xf32>
    %36 = vector.shape_cast %35 : vector<1x32x1xf32> to vector<32x1xf32>
    %37 = vector.broadcast %36 : vector<32x1xf32> to vector<32x128xf32>
    %38 = arith.addf %34, %37 : vector<32x128xf32>
    %cst_28 = arith.constant 0.000000e+00 : f32
    %39 = vector.broadcast %cst_28 : f32 to vector<32x128xf32>
    %40 = arith.maximumf %38, %39 : vector<32x128xf32>
    %41 = arith.truncf %40 : vector<32x128xf32> to vector<32x128xbf16>
    %c4 = arith.constant 4 : index
    %c0_29 = arith.constant 0 : index
    %c0_30 = arith.constant 0 : index
    %42 = vector.load %arg1[%c4, %c0_29, %c0_30] : memref<6x32x32xbf16, #tpu.memory_space<vmem>>, vector<1x16x32xbf16>
    %43 = vector.shape_cast %42 : vector<1x16x32xbf16> to vector<16x32xbf16>
    %cst_31 = arith.constant dense<0.000000e+00> : vector<16x128xf32>
    %44 = tpu.matmul %43, %41, %cst_31 {dimension_numbers = #tpu.dot_dimension_numbers<[1], [0], [0], [1], [0, 0, 1, 1], [], []>} : vector<16x32xbf16>, vector<32x128xbf16>, vector<16x128xf32> -> vector<16x128xf32>
    %c4_32 = arith.constant 4 : index
    %c0_33 = arith.constant 0 : index
    %c0_34 = arith.constant 0 : index
    %45 = vector.load %arg2[%c4_32, %c0_33, %c0_34] : memref<6x32x1xf32, #tpu.memory_space<vmem>>, vector<1x16x1xf32>
    %46 = vector.shape_cast %45 : vector<1x16x1xf32> to vector<16x1xf32>
    %47 = vector.broadcast %46 : vector<16x1xf32> to vector<16x128xf32>
    %48 = arith.addf %44, %47 : vector<16x128xf32>
    %cst_35 = arith.constant 0.000000e+00 : f32
    %49 = vector.broadcast %cst_35 : f32 to vector<16x128xf32>
    %50 = arith.maximumf %48, %49 : vector<16x128xf32>
    %51 = arith.truncf %50 : vector<16x128xf32> to vector<16x128xbf16>
    %c5 = arith.constant 5 : index
    %c0_36 = arith.constant 0 : index
    %c0_37 = arith.constant 0 : index
    %52 = vector.load %arg1[%c5, %c0_36, %c0_37] : memref<6x32x32xbf16, #tpu.memory_space<vmem>>, vector<1x32x16xbf16>
    %53 = vector.shape_cast %52 : vector<1x32x16xbf16> to vector<32x16xbf16>
    %cst_38 = arith.constant dense<0.000000e+00> : vector<32x128xf32>
    %54 = tpu.matmul %53, %51, %cst_38 {dimension_numbers = #tpu.dot_dimension_numbers<[1], [0], [0], [1], [0, 0, 1, 1], [], []>} : vector<32x16xbf16>, vector<16x128xbf16>, vector<32x128xf32> -> vector<32x128xf32>
    %c5_39 = arith.constant 5 : index
    %c0_40 = arith.constant 0 : index
    %c0_41 = arith.constant 0 : index
    %55 = vector.load %arg2[%c5_39, %c0_40, %c0_41] : memref<6x32x1xf32, #tpu.memory_space<vmem>>, vector<1x32x1xf32>
    %56 = vector.shape_cast %55 : vector<1x32x1xf32> to vector<32x1xf32>
    %57 = vector.broadcast %56 : vector<32x1xf32> to vector<32x128xf32>
    %58 = arith.addf %54, %57 : vector<32x128xf32>
    %59 = tpu.transpose %58, [1, 0] : vector<32x128xf32> -> vector<128x32xf32>
    %60 = vector.extract_strided_slice %59 {offsets = [0, 0], sizes = [128, 20], strides = [1, 1]} : vector<128x32xf32> to vector<128x20xf32>
    %c0_42 = arith.constant 0 : index
    %c0_43 = arith.constant 0 : index
    %61 = vector.load %arg4[%c0_42, %c0_43] : memref<128x20xf32, #tpu.memory_space<vmem>>, vector<128x20xf32>
    tpu.vector_store %arg4[%c0_42, %c0_43], %60 {strides = array<i32>} : memref<128x20xf32, #tpu.memory_space<vmem>>, vector<128x20xf32>,
    return
  }
  func.func @transform_0(%arg0: i32) -> (i32, i32, i32) {
    %c0_i32 = arith.constant 0 : i32
    %c0_i32_0 = arith.constant 0 : i32
    %c0_i32_1 = arith.constant 0 : i32
    %c0_i32_2 = arith.constant 0 : i32
    return %c0_i32, %c0_i32_0, %c0_i32_1 : i32, i32, i32
  }
  func.func @transform_1(%arg0: i32) -> (i32, i32, i32) {
    %c0_i32 = arith.constant 0 : i32
    %c0_i32_0 = arith.constant 0 : i32
    %c0_i32_1 = arith.constant 0 : i32
    %c0_i32_2 = arith.constant 0 : i32
    return %c0_i32, %c0_i32_0, %c0_i32_1 : i32, i32, i32
  }
  func.func @transform_2(%arg0: i32) -> (i32, i32) {
    %c0_i32 = arith.constant 0 : i32
    %c0_i32_0 = arith.constant 0 : i32
    return %arg0, %c0_i32 : i32, i32
  }
  func.func @transform_3(%arg0: i32) -> (i32, i32) {
    %c0_i32 = arith.constant 0 : i32
    %c0_i32_0 = arith.constant 0 : i32
    return %arg0, %c0_i32 : i32, i32
  }
}

</mosaic_0001>

<llo_original>
// kernel: uncertainty_net.1
$region0: #{uncertainty_net.1}
  #allocation0 [shape = 'u32[]', space=smem, size = 0x4, offset = 0x4, fixed_abs, tag = 'smem constant byte address 0x4 - core index']
  #allocation1 [shape = 'u32[144,128]{1,0:T(1,128)}', space=vmem, size = 0x12000, scoped, tag = 'internal scratch']
  %s0 = inlined_call_operand.vmem [shape: bf16[6,32,32], index: 0, kind: input, shape index: {}]
  %s1 = inlined_call_operand.vmem [shape: f32[6,32,1], index: 1, kind: input, shape index: {}]
  %s2 = inlined_call_operand.vmem [shape: f32[8,20], index: 2, kind: input, shape index: {}]
  %s3 = inlined_call_operand.hbm [shape: f32[8,20], index: 3, kind: output, shape index: {}]
  %s4 = sld [smem:[#allocation0]]
  $region22: #{uncertainty_net.1} parent=0
    _
  %s6 = ssub.s32 1, %s4
  %s7 = scalar_select 0, %s6, %s4
  $region1: #{uncertainty_net.1} parent=0
    #allocation2 [shape = 'u8[65536]{0}', space=vmem, size = 0x10000, scoped, tag = 'output window, operand 0, single buffered']
    #allocation3 [shape = 's32[1]{0}', space=sflag, size = 0x4, scoped, tag = 'scoped memory for uncertainty_net.1']
    %8 = vsyncpa [#allocation3], 0
    // Predicated region
    $region2: #{uncertainty_net.1} parent=1 // pred_check
      _
    $region3: #{uncertainty_net.1} parent=1 // pred_check_branch
      %10 = sbr.rel (0) target = $region5
    $region4: #{uncertainty_net.1} parent=1 // pred_region
      _
    $region5: #{uncertainty_net.1} parent=1 // pred_fallthru
      _
    // Predicated region
    $region6: #{uncertainty_net.1} parent=1 // pred_check
      _
    $region7: #{uncertainty_net.1} parent=1 // pred_check_branch
      %12 = sbr.rel (0) target = $region9
    $region8: #{uncertainty_net.1} parent=1 // pred_region
      _
    $region9: #{uncertainty_net.1} parent=1 // pred_fallthru
      _
    // Predicated region
    $region10: #{uncertainty_net.1} parent=1 // pred_check
      _
    $region11: #{uncertainty_net.1} parent=1 // pred_check_branch
      %14 = sbr.rel (0) target = $region13
    $region12: #{uncertainty_net.1} parent=1 // pred_region
      _
    $region13: #{uncertainty_net.1} parent=1 // pred_fallthru
      _
    %v16 = vld [vmem:[%s2] sm:$0xff]
    %v17 = vld [vmem:[%s2 + $0x8] sm:$0xff]
    %v18 = vld [vmem:[%s2 + $0x10] sm:$0xff]
    %v19 = vld [vmem:[%s2 + $0x18] sm:$0xff]
    %v20 = vld [vmem:[%s2 + $0x20] sm:$0xff]
    %v21 = vld [vmem:[%s2 + $0x28] sm:$0xff]
    %v22 = vld [vmem:[%s2 + $0x30] sm:$0xff]
    %v23 = vld [vmem:[%s2 + $0x38] sm:$0xff]
    %v24 = vld [vmem:[%s2 + $0x40] sm:$0xff]
    %v25 = vld [vmem:[%s2 + $0x48] sm:$0xff]
    %v26 = vld [vmem:[%s2 + $0x50] sm:$0xff]
    %v27 = vld [vmem:[%s2 + $0x58] sm:$0xff]
    %v28 = vld [vmem:[%s2 + $0x60] sm:$0xff]
    %v29 = vld [vmem:[%s2 + $0x68] sm:$0xff]
    %v30 = vld [vmem:[%s2 + $0x70] sm:$0xff]
    %v31 = vld [vmem:[%s2 + $0x78] sm:$0xff]
    %v32 = vpack.c.bf16 %v17, %v16
    %v33 = vpack.c.bf16 %v19, %v18
    %v34 = vpack.c.bf16 %v21, %v20
    %v35 = vpack.c.bf16 %v23, %v22
    %v36 = vpack.c.bf16 %v25, %v24
    %v37 = vpack.c.bf16 %v27, %v26
    %v38 = vpack.c.bf16 %v29, %v28
    %v39 = vpack.c.bf16 %v31, %v30
    %v40 = vld [vmem:[%s0] sm:$0xf]
    %v41 = vld [vmem:[%s0 + $0x4] sm:$0xf]
    %v42 = vld [vmem:[%s1] sm:$0xff]
    %v43 = vld [vmem:[%s1 + $0x8] sm:$0xff]
    %45 = vset.pattern.permute.xlu0 0
    %46 = vperm.xlu0 %45, %v42
    %v47 = vpop.permute.xlu0 %46
    %50 = vset.pattern.permute.xlu0 0
    %51 = vperm.xlu0 %50, %v43
    %v52 = vpop.permute.xlu0 %51
    %v56 = vunpack.c.l.b16 %v40
    %v57 = vunpack.c.l.b16 %v41
    %v58 = vpack.c.b16 %v57, %v56
    %vm59 = vcmask 162816
    %v61 = vsel %vm59, %v58, 0
    %v64 = vsel %vm59, %v32, 0
    %v67 = vsel %vm59, %v33, 0
    %v70 = vsel %vm59, %v34, 0
    %v73 = vsel %vm59, %v35, 0
    %v76 = vsel %vm59, %v36, 0
    %v79 = vsel %vm59, %v37, 0
    %v82 = vsel %vm59, %v38, 0
    %v85 = vsel %vm59, %v39, 0
    %87 = vmatprep.subr.bf16.mxu0 0
    %88 = vmatpush1.bf16.xpose.msra.mxu0 %v64
    %89 = vmatprep.subr.bf16.mxu0 0
    %90 = vmatpush1.bf16.xpose.msra.mxu0 %v67
    %91 = vmatprep.subr.bf16.mxu0 0
    %92 = vmatpush1.bf16.xpose.msra.mxu0 %v70
    %93 = vmatprep.subr.bf16.mxu0 0
    %94 = vmatpush1.bf16.xpose.msra.mxu0 %v73
    %95 = vmatprep.subr.bf16.mxu0 0
    %96 = vmatpush1.bf16.xpose.msra.mxu0 %v76
    %97 = vmatprep.subr.bf16.mxu0 0
    %98 = vmatpush1.bf16.xpose.msra.mxu0 %v79
    %99 = vmatprep.subr.bf16.mxu0 0
    %100 = vmatpush1.bf16.xpose.msra.mxu0 %v82
    %101 = vmatprep.subr.bf16.mxu0 0
    %102 = vmatpush1.bf16.xpose.msra.mxu0 %v85
    %103 = vmatprep.subr.bf16.mxu0 0
    %104 = vmatpush1.bf16.xpose.msra.mxu0 0
    %105 = vmatprep.subr.bf16.mxu0 0
    %106 = vmatpush1.bf16.xpose.msra.mxu0 0
    %107 = vmatprep.subr.bf16.mxu0 0
    %108 = vmatpush1.bf16.xpose.msra.mxu0 0
    %109 = vmatprep.subr.bf16.mxu0 0
    %110 = vmatpush1.bf16.xpose.msra.mxu0 0
    %111 = vmatprep.subr.bf16.mxu0 0
    %112 = vmatpush1.bf16.xpose.msra.mxu0 0
    %113 = vmatprep.subr.bf16.mxu0 0
    %114 = vmatpush1.bf16.xpose.msra.mxu0 0
    %115 = vmatprep.subr.bf16.mxu0 0
    %116 = vmatpush1.bf16.xpose.msra.mxu0 0
    %117 = vmatprep.subr.bf16.mxu0 0
    %118 = vmatpush1.bf16.xpose.msra.mxu0 0
    %119 = vmatprep.mubr.bf16.mxu0 0
    %120 = vmatmul.mubr.bf16.gmra.mrb[0].mxu0 %v61
    %v121 = vpop.f32.mrb[0].mxu0
    %v122 = vadd.f32 %v47, %v121
    %v123 = vpop.f32.mrb[0].mxu0
    %v124 = vpop.f32.mrb[0].mxu0
    %v125 = vadd.f32 %v52, %v124
    %v126 = vpop.f32.mrb[0].mxu0
    %127 = vdwg.mxu0
    %v128 = vmax.f32 %v122, 0.0
    %v129 = vmax.f32 %v125, 0.0
    %v130 = vpack.c.bf16 %v129, %v128
    %s131 = scalar_lea.vmem %s0, 16
    %v132 = vld [vmem:[%s131] sm:$0xf]
    %v133 = vld [vmem:[%s131 + $0x4] sm:$0xf]
    %v134 = vld [vmem:[%s131 + $0x8] sm:$0xf]
    %v135 = vld [vmem:[%s131 + $0xc] sm:$0xf]
    %s136 = scalar_lea.vmem %s1, 32
    %v137 = vld [vmem:[%s136] sm:$0xff]
    %v138 = vld [vmem:[%s136 + $0x8] sm:$0xff]
    %v139 = vld [vmem:[%s136 + $0x10] sm:$0xff]
    %v140 = vld [vmem:[%s136 + $0x18] sm:$0xff]
    %142 = vset.pattern.permute.xlu0 0
    %143 = vperm.xlu0 %142, %v137
    %v144 = vpop.permute.xlu0 %143
    %147 = vset.pattern.permute.xlu0 0
    %148 = vperm.xlu0 %147, %v138
    %v149 = vpop.permute.xlu0 %148
    %152 = vset.pattern.permute.xlu0 0
    %153 = vperm.xlu0 %152, %v139
    %v154 = vpop.permute.xlu0 %153
    %157 = vset.pattern.permute.xlu0 0
    %158 = vperm.xlu0 %157, %v140
    %v159 = vpop.permute.xlu0 %158
    %v165 = vunpack.c.l.b16 %v132
    %v166 = vunpack.c.l.b16 %v133
    %v167 = vunpack.c.l.b16 %v134
    %v168 = vunpack.c.l.b16 %v135
    %v169 = vpack.c.b16 %v166, %v165
    %v170 = vpack.c.b16 %v168, %v167
    %vm171 = vcmask 130048
    %v173 = vsel %vm171, %v169, 0
    %v176 = vsel %vm171, %v170, 0
    %178 = vmatprep.subr.bf16.mxu0 0
    %179 = vmatpush1.bf16.msra.mxu0 %v130
    %180 = vmatprep.subr.bf16.mxu0 0
    %181 = vmatpush1.bf16.msra.mxu0 0
    %182 = vmatprep.subr.bf16.mxu0 0
    %183 = vmatpush1.bf16.msra.mxu0 0
    %184 = vmatprep.subr.bf16.mxu0 0
    %185 = vmatpush1.bf16.msra.mxu0 0
    %186 = vmatprep.subr.bf16.mxu0 0
    %187 = vmatpush1.bf16.msra.mxu0 0
    %188 = vmatprep.subr.bf16.mxu0 0
    %189 = vmatpush1.bf16.msra.mxu0 0
    %190 = vmatprep.subr.bf16.mxu0 0
    %191 = vmatpush1.bf16.msra.mxu0 0
    %192 = vmatprep.subr.bf16.mxu0 0
    %193 = vmatpush1.bf16.msra.mxu0 0
    %194 = vmatprep.subr.bf16.mxu0 0
    %195 = vmatpush1.bf16.msra.mxu0 0
    %196 = vmatprep.subr.bf16.mxu0 0
    %197 = vmatpush1.bf16.msra.mxu0 0
    %198 = vmatprep.subr.bf16.mxu0 0
    %199 = vmatpush1.bf16.msra.mxu0 0
    %200 = vmatprep.subr.bf16.mxu0 0
    %201 = vmatpush1.bf16.msra.mxu0 0
    %202 = vmatprep.subr.bf16.mxu0 0
    %203 = vmatpush1.bf16.msra.mxu0 0
    %204 = vmatprep.subr.bf16.mxu0 0
    %205 = vmatpush1.bf16.msra.mxu0 0
    %206 = vmatprep.subr.bf16.mxu0 0
    %207 = vmatpush1.bf16.msra.mxu0 0
    %208 = vmatprep.subr.bf16.mxu0 0
    %209 = vmatpush1.bf16.msra.mxu0 0
    %210 = vmatprep.mubr.bf16.mxu0 0
    %211 = vmatmul.mubr.bf16.gmra.mrb[0].mxu0 %v173
    %v212 = vpop.f32.mrb[0].mxu0
    %v213 = vadd.f32 %v144, %v212
    %v214 = vpop.f32.mrb[0].mxu0
    %v215 = vpop.f32.mrb[0].mxu0
    %v216 = vadd.f32 %v149, %v215
    %v217 = vpop.f32.mrb[0].mxu0
    %218 = vmatprep.mubr.bf16.mxu0 0
    %219 = vmatmul.mubr.bf16.gmra.mrb[0].mxu0 %v176
    %v220 = vpop.f32.mrb[0].mxu0
    %v221 = vadd.f32 %v154, %v220
    %v222 = vpop.f32.mrb[0].mxu0
    %v223 = vpop.f32.mrb[0].mxu0
    %v224 = vadd.f32 %v159, %v223
    %v225 = vpop.f32.mrb[0].mxu0
    %226 = vdwg.mxu0
    %v227 = vmax.f32 %v213, 0.0
    %v228 = vmax.f32 %v216, 0.0
    %v229 = vmax.f32 %v221, 0.0
    %v230 = vmax.f32 %v224, 0.0
    %v231 = vpack.c.bf16 %v228, %v227
    %v232 = vpack.c.bf16 %v230, %v229
    %s233 = scalar_lea.vmem %s0, 32
    %v234 = vld [vmem:[%s233] sm:$0xf]
    %v235 = vld [vmem:[%s233 + $0x4] sm:$0xf]
    %v236 = vld [vmem:[%s233 + $0x8] sm:$0xf]
    %v237 = vld [vmem:[%s233 + $0xc] sm:$0xf]
    %s238 = scalar_lea.vmem %s1, 64
    %v239 = vld [vmem:[%s238] sm:$0xff]
    %v240 = vld [vmem:[%s238 + $0x8] sm:$0xff]
    %v241 = vld [vmem:[%s238 + $0x10] sm:$0xff]
    %v242 = vld [vmem:[%s238 + $0x18] sm:$0xff]
    %244 = vset.pattern.permute.xlu0 0
    %245 = vperm.xlu0 %244, %v239
    %v246 = vpop.permute.xlu0 %245
    %249 = vset.pattern.permute.xlu0 0
    %250 = vperm.xlu0 %249, %v240
    %v251 = vpop.permute.xlu0 %250
    %254 = vset.pattern.permute.xlu0 0
    %255 = vperm.xlu0 %254, %v241
    %v256 = vpop.permute.xlu0 %255
    %259 = vset.pattern.permute.xlu0 0
    %260 = vperm.xlu0 %259, %v242
    %v261 = vpop.permute.xlu0 %260
    %v267 = vunpack.c.l.b16 %v234
    %v268 = vunpack.c.l.b16 %v235
    %v269 = vunpack.c.l.b16 %v236
    %v270 = vunpack.c.l.b16 %v237
    %v271 = vpack.c.b16 %v268, %v267
    %v272 = vpack.c.b16 %v270, %v269
    %vm273 = vcmask 261120
    %v275 = vsel %vm273, %v271, 0
    %v278 = vsel %vm273, %v272, 0
    %280 = vmatprep.subr.bf16.mxu0 0
    %281 = vmatpush1.bf16.msra.mxu0 %v231
    %282 = vmatprep.subr.bf16.mxu0 0
    %283 = vmatpush1.bf16.msra.mxu0 %v232
    %284 = vmatprep.subr.bf16.mxu0 0
    %285 = vmatpush1.bf16.msra.mxu0 0
    %286 = vmatprep.subr.bf16.mxu0 0
    %287 = vmatpush1.bf16.msra.mxu0 0
    %288 = vmatprep.subr.bf16.mxu0 0
    %289 = vmatpush1.bf16.msra.mxu0 0
    %290 = vmatprep.subr.bf16.mxu0 0
    %291 = vmatpush1.bf16.msra.mxu0 0
    %292 = vmatprep.subr.bf16.mxu0 0
    %293 = vmatpush1.bf16.msra.mxu0 0
    %294 = vmatprep.subr.bf16.mxu0 0
    %295 = vmatpush1.bf16.msra.mxu0 0
    %296 = vmatprep.subr.bf16.mxu0 0
    %297 = vmatpush1.bf16.msra.mxu0 0
    %298 = vmatprep.subr.bf16.mxu0 0
    %299 = vmatpush1.bf16.msra.mxu0 0
    %300 = vmatprep.subr.bf16.mxu0 0
    %301 = vmatpush1.bf16.msra.mxu0 0
    %302 = vmatprep.subr.bf16.mxu0 0
    %303 = vmatpush1.bf16.msra.mxu0 0
    %304 = vmatprep.subr.bf16.mxu0 0
    %305 = vmatpush1.bf16.msra.mxu0 0
    %306 = vmatprep.subr.bf16.mxu0 0
    %307 = vmatpush1.bf16.msra.mxu0 0
    %308 = vmatprep.subr.bf16.mxu0 0
    %309 = vmatpush1.bf16.msra.mxu0 0
    %310 = vmatprep.subr.bf16.mxu0 0
    %311 = vmatpush1.bf16.msra.mxu0 0
    %312 = vmatprep.mubr.bf16.mxu0 0
    %313 = vmatmul.mubr.bf16.gmra.mrb[0].mxu0 %v275
    %v314 = vpop.f32.mrb[0].mxu0
    %v315 = vadd.f32 %v246, %v314
    %v316 = vpop.f32.mrb[0].mxu0
    %v317 = vpop.f32.mrb[0].mxu0
    %v318 = vadd.f32 %v251, %v317
    %v319 = vpop.f32.mrb[0].mxu0
    %320 = vmatprep.mubr.bf16.mxu0 0
    %321 = vmatmul.mubr.bf16.gmra.mrb[0].mxu0 %v278
    %v322 = vpop.f32.mrb[0].mxu0
    %v323 = vadd.f32 %v256, %v322
    %v324 = vpop.f32.mrb[0].mxu0
    %v325 = vpop.f32.mrb[0].mxu0
    %v326 = vadd.f32 %v261, %v325
    %v327 = vpop.f32.mrb[0].mxu0
    %328 = vdwg.mxu0
    %v329 = vmax.f32 %v315, 0.0
    %v330 = vmax.f32 %v318, 0.0
    %v331 = vmax.f32 %v323, 0.0
    %v332 = vmax.f32 %v326, 0.0
    %v333 = vpack.c.bf16 %v330, %v329
    %v334 = vpack.c.bf16 %v332, %v331
    %s335 = scalar_lea.vmem %s0, 48
    %v336 = vld [vmem:[%s335] sm:$0xf]
    %v337 = vld [vmem:[%s335 + $0x4] sm:$0xf]
    %v338 = vld [vmem:[%s335 + $0x8] sm:$0xf]
    %v339 = vld [vmem:[%s335 + $0xc] sm:$0xf]
    %s340 = scalar_lea.vmem %s1, 96
    %v341 = vld [vmem:[%s340] sm:$0xff]
    %v342 = vld [vmem:[%s340 + $0x8] sm:$0xff]
    %v343 = vld [vmem:[%s340 + $0x10] sm:$0xff]
    %v344 = vld [vmem:[%s340 + $0x18] sm:$0xff]
    %346 = vset.pattern.permute.xlu0 0
    %347 = vperm.xlu0 %346, %v341
    %v348 = vpop.permute.xlu0 %347
    %351 = vset.pattern.permute.xlu0 0
    %352 = vperm.xlu0 %351, %v342
    %v353 = vpop.permute.xlu0 %352
    %356 = vset.pattern.permute.xlu0 0
    %357 = vperm.xlu0 %356, %v343
    %v358 = vpop.permute.xlu0 %357
    %361 = vset.pattern.permute.xlu0 0
    %362 = vperm.xlu0 %361, %v344
    %v363 = vpop.permute.xlu0 %362
    %v369 = vunpack.c.l.b16 %v336
    %v370 = vunpack.c.l.b16 %v337
    %v371 = vunpack.c.l.b16 %v338
    %v372 = vunpack.c.l.b16 %v339
    %v373 = vpack.c.b16 %v370, %v369
    %v374 = vpack.c.b16 %v372, %v371
    %v376 = vsel %vm273, %v373, 0
    %v379 = vsel %vm273, %v374, 0
    %381 = vmatprep.subr.bf16.mxu0 0
    %382 = vmatpush1.bf16.msra.mxu0 %v333
    %383 = vmatprep.subr.bf16.mxu0 0
    %384 = vmatpush1.bf16.msra.mxu0 %v334
    %385 = vmatprep.subr.bf16.mxu0 0
    %386 = vmatpush1.bf16.msra.mxu0 0
    %387 = vmatprep.subr.bf16.mxu0 0
    %388 = vmatpush1.bf16.msra.mxu0 0
    %389 = vmatprep.subr.bf16.mxu0 0
    %390 = vmatpush1.bf16.msra.mxu0 0
    %391 = vmatprep.subr.bf16.mxu0 0
    %392 = vmatpush1.bf16.msra.mxu0 0
    %393 = vmatprep.subr.bf16.mxu0 0
    %394 = vmatpush1.bf16.msra.mxu0 0
    %395 = vmatprep.subr.bf16.mxu0 0
    %396 = vmatpush1.bf16.msra.mxu0 0
    %397 = vmatprep.subr.bf16.mxu0 0
    %398 = vmatpush1.bf16.msra.mxu0 0
    %399 = vmatprep.subr.bf16.mxu0 0
    %400 = vmatpush1.bf16.msra.mxu0 0
    %401 = vmatprep.subr.bf16.mxu0 0
    %402 = vmatpush1.bf16.msra.mxu0 0
    %403 = vmatprep.subr.bf16.mxu0 0
    %404 = vmatpush1.bf16.msra.mxu0 0
    %405 = vmatprep.subr.bf16.mxu0 0
    %406 = vmatpush1.bf16.msra.mxu0 0
    %407 = vmatprep.subr.bf16.mxu0 0
    %408 = vmatpush1.bf16.msra.mxu0 0
    %409 = vmatprep.subr.bf16.mxu0 0
    %410 = vmatpush1.bf16.msra.mxu0 0
    %411 = vmatprep.subr.bf16.mxu0 0
    %412 = vmatpush1.bf16.msra.mxu0 0
    %413 = vmatprep.mubr.bf16.mxu0 0
    %414 = vmatmul.mubr.bf16.gmra.mrb[0].mxu0 %v376
    %v415 = vpop.f32.mrb[0].mxu0
    %v416 = vadd.f32 %v348, %v415
    %v417 = vpop.f32.mrb[0].mxu0
    %v418 = vpop.f32.mrb[0].mxu0
    %v419 = vadd.f32 %v353, %v418
    %v420 = vpop.f32.mrb[0].mxu0
    %421 = vmatprep.mubr.bf16.mxu0 0
    %422 = vmatmul.mubr.bf16.gmra.mrb[0].mxu0 %v379
    %v423 = vpop.f32.mrb[0].mxu0
    %v424 = vadd.f32 %v358, %v423
    %v425 = vpop.f32.mrb[0].mxu0
    %v426 = vpop.f32.mrb[0].mxu0
    %v427 = vadd.f32 %v363, %v426
    %v428 = vpop.f32.mrb[0].mxu0
    %429 = vdwg.mxu0
    %v430 = vmax.f32 %v416, 0.0
    %v431 = vmax.f32 %v419, 0.0
    %v432 = vmax.f32 %v424, 0.0
    %v433 = vmax.f32 %v427, 0.0
    %v434 = vpack.c.bf16 %v431, %v430
    %v435 = vpack.c.bf16 %v433, %v432
    %s436 = scalar_lea.vmem %s0, 64
    %v437 = vld [vmem:[%s436] sm:$0xf]
    %v438 = vld [vmem:[%s436 + $0x4] sm:$0xf]
    %s439 = scalar_lea.vmem %s1, 128
    %v440 = vld [vmem:[%s439] sm:$0xff]
    %v441 = vld [vmem:[%s439 + $0x8] sm:$0xff]
    %443 = vset.pattern.permute.xlu0 0
    %444 = vperm.xlu0 %443, %v440
    %v445 = vpop.permute.xlu0 %444
    %448 = vset.pattern.permute.xlu0 0
    %449 = vperm.xlu0 %448, %v441
    %v450 = vpop.permute.xlu0 %449
    %v454 = vunpack.c.l.b16 %v437
    %v455 = vunpack.c.l.b16 %v438
    %v456 = vpack.c.b16 %v455, %v454
    %v458 = vsel %vm273, %v456, 0
    %460 = vmatprep.subr.bf16.mxu0 0
    %461 = vmatpush1.bf16.msra.mxu0 %v434
    %462 = vmatprep.subr.bf16.mxu0 0
    %463 = vmatpush1.bf16.msra.mxu0 %v435
    %464 = vmatprep.subr.bf16.mxu0 0
    %465 = vmatpush1.bf16.msra.mxu0 0
    %466 = vmatprep.subr.bf16.mxu0 0
    %467 = vmatpush1.bf16.msra.mxu0 0
    %468 = vmatprep.subr.bf16.mxu0 0
    %469 = vmatpush1.bf16.msra.mxu0 0
    %470 = vmatprep.subr.bf16.mxu0 0
    %471 = vmatpush1.bf16.msra.mxu0 0
    %472 = vmatprep.subr.bf16.mxu0 0
    %473 = vmatpush1.bf16.msra.mxu0 0
    %474 = vmatprep.subr.bf16.mxu0 0
    %475 = vmatpush1.bf16.msra.mxu0 0
    %476 = vmatprep.subr.bf16.mxu0 0
    %477 = vmatpush1.bf16.msra.mxu0 0
    %478 = vmatprep.subr.bf16.mxu0 0
    %479 = vmatpush1.bf16.msra.mxu0 0
    %480 = vmatprep.subr.bf16.mxu0 0
    %481 = vmatpush1.bf16.msra.mxu0 0
    %482 = vmatprep.subr.bf16.mxu0 0
    %483 = vmatpush1.bf16.msra.mxu0 0
    %484 = vmatprep.subr.bf16.mxu0 0
    %485 = vmatpush1.bf16.msra.mxu0 0
    %486 = vmatprep.subr.bf16.mxu0 0
    %487 = vmatpush1.bf16.msra.mxu0 0
    %488 = vmatprep.subr.bf16.mxu0 0
    %489 = vmatpush1.bf16.msra.mxu0 0
    %490 = vmatprep.subr.bf16.mxu0 0
    %491 = vmatpush1.bf16.msra.mxu0 0
    %492 = vmatprep.mubr.bf16.mxu0 0
    %493 = vmatmul.mubr.bf16.gmra.mrb[0].mxu0 %v458
    %v494 = vpop.f32.mrb[0].mxu0
    %v495 = vadd.f32 %v445, %v494
    %v496 = vpop.f32.mrb[0].mxu0
    %v497 = vpop.f32.mrb[0].mxu0
    %v498 = vadd.f32 %v450, %v497
    %v499 = vpop.f32.mrb[0].mxu0
    %500 = vdwg.mxu0
    %v501 = vmax.f32 %v495, 0.0
    %v502 = vmax.f32 %v498, 0.0
    %v503 = vpack.c.bf16 %v502, %v501
    %s504 = scalar_lea.vmem %s0, 80
    %v505 = vld [vmem:[%s504] sm:$0xf]
    %v506 = vld [vmem:[%s504 + $0x4] sm:$0xf]
    %v507 = vld [vmem:[%s504 + $0x8] sm:$0xf]
    %v508 = vld [vmem:[%s504 + $0xc] sm:$0xf]
    %s509 = scalar_lea.vmem %s1, 160
    %v510 = vld [vmem:[%s509] sm:$0xff]
    %v511 = vld [vmem:[%s509 + $0x8] sm:$0xff]
    %v512 = vld [vmem:[%s509 + $0x10] sm:$0xff]
    %v513 = vld [vmem:[%s509 + $0x18] sm:$0xff]
    %515 = vset.pattern.permute.xlu0 0
    %516 = vperm.xlu0 %515, %v510
    %v517 = vpop.permute.xlu0 %516
    %520 = vset.pattern.permute.xlu0 0
    %521 = vperm.xlu0 %520, %v511
    %v522 = vpop.permute.xlu0 %521
    %525 = vset.pattern.permute.xlu0 0
    %526 = vperm.xlu0 %525, %v512
    %v527 = vpop.permute.xlu0 %526
    %530 = vset.pattern.permute.xlu0 0
    %531 = vperm.xlu0 %530, %v513
    %v532 = vpop.permute.xlu0 %531
    %v538 = vunpack.c.l.b16 %v505
    %v539 = vunpack.c.l.b16 %v506
    %v540 = vunpack.c.l.b16 %v507
    %v541 = vunpack.c.l.b16 %v508
    %v542 = vpack.c.b16 %v539, %v538
    %v543 = vpack.c.b16 %v541, %v540
    %v545 = vsel %vm171, %v542, 0
    %v548 = vsel %vm171, %v543, 0
    %550 = vmatprep.subr.bf16.mxu0 0
    %551 = vmatpush1.bf16.msra.mxu0 %v503
    %552 = vmatprep.subr.bf16.mxu0 0
    %553 = vmatpush1.bf16.msra.mxu0 0
    %554 = vmatprep.subr.bf16.mxu0 0
    %555 = vmatpush1.bf16.msra.mxu0 0
    %556 = vmatprep.subr.bf16.mxu0 0
    %557 = vmatpush1.bf16.msra.mxu0 0
    %558 = vmatprep.subr.bf16.mxu0 0
    %559 = vmatpush1.bf16.msra.mxu0 0
    %560 = vmatprep.subr.bf16.mxu0 0
    %561 = vmatpush1.bf16.msra.mxu0 0
    %562 = vmatprep.subr.bf16.mxu0 0
    %563 = vmatpush1.bf16.msra.mxu0 0
    %564 = vmatprep.subr.bf16.mxu0 0
    %565 = vmatpush1.bf16.msra.mxu0 0
    %566 = vmatprep.subr.bf16.mxu0 0
    %567 = vmatpush1.bf16.msra.mxu0 0
    %568 = vmatprep.subr.bf16.mxu0 0
    %569 = vmatpush1.bf16.msra.mxu0 0
    %570 = vmatprep.subr.bf16.mxu0 0
    %571 = vmatpush1.bf16.msra.mxu0 0
    %572 = vmatprep.subr.bf16.mxu0 0
    %573 = vmatpush1.bf16.msra.mxu0 0
    %574 = vmatprep.subr.bf16.mxu0 0
    %575 = vmatpush1.bf16.msra.mxu0 0
    %576 = vmatprep.subr.bf16.mxu0 0
    %577 = vmatpush1.bf16.msra.mxu0 0
    %578 = vmatprep.subr.bf16.mxu0 0
    %579 = vmatpush1.bf16.msra.mxu0 0
    %580 = vmatprep.subr.bf16.mxu0 0
    %581 = vmatpush1.bf16.msra.mxu0 0
    %582 = vmatprep.mubr.bf16.mxu0 0
    %583 = vmatmul.mubr.bf16.gmra.mrb[0].mxu0 %v545
    %v584 = vpop.f32.mrb[0].mxu0
    %v585 = vadd.f32 %v517, %v584
    %v586 = vpop.f32.mrb[0].mxu0
    %v587 = vpop.f32.mrb[0].mxu0
    %v588 = vadd.f32 %v522, %v587
    %v589 = vpop.f32.mrb[0].mxu0
    %590 = vmatprep.mubr.bf16.mxu0 0
    %591 = vmatmul.mubr.bf16.gmra.mrb[0].mxu0 %v548
    %v592 = vpop.f32.mrb[0].mxu0
    %v593 = vadd.f32 %v527, %v592
    %v594 = vpop.f32.mrb[0].mxu0
    %v595 = vpop.f32.mrb[0].mxu0
    %v596 = vadd.f32 %v532, %v595
    %v597 = vpop.f32.mrb[0].mxu0
    %598 = vdwg.mxu0
    %599 = vxpose.xlu0.b32.start [1/16] %v585, 128
    %600 = vxpose.xlu0.b32.cont [2/16] %v588, 128
    %601 = vxpose.xlu0.b32.cont [3/16] %v593, 128
    %602 = vxpose.xlu0.b32.cont [4/16] %v596, 128
    %603 = vxpose.xlu0.b32.cont [5/16] 0.0, 128
    %604 = vxpose.xlu0.b32.cont [6/16] 0.0, 128
    %605 = vxpose.xlu0.b32.cont [7/16] 0.0, 128
    %606 = vxpose.xlu0.b32.cont [8/16] 0.0, 128
    %607 = vxpose.xlu0.b32.cont [9/16] 0.0, 128
    %608 = vxpose.xlu0.b32.cont [10/16] 0.0, 128
    %609 = vxpose.xlu0.b32.cont [11/16] 0.0, 128
    %610 = vxpose.xlu0.b32.cont [12/16] 0.0, 128
    %611 = vxpose.xlu0.b32.cont [13/16] 0.0, 128
    %612 = vxpose.xlu0.b32.cont [14/16] 0.0, 128
    %613 = vxpose.xlu0.b32.cont [15/16] 0.0, 128
    %614 = vxpose.xlu0.b32.end [16/16] 0.0, 128
    %v615 = vpop.trf.xlu0
    %v616 = vpop.trf.xlu0
    %v617 = vpop.trf.xlu0
    %v618 = vpop.trf.xlu0
    %v619 = vpop.trf.xlu0
    %v620 = vpop.trf.xlu0
    %v621 = vpop.trf.xlu0
    %v622 = vpop.trf.xlu0
    %v623 = vpop.trf.xlu0
    %v624 = vpop.trf.xlu0
    %v625 = vpop.trf.xlu0
    %v626 = vpop.trf.xlu0
    %v627 = vpop.trf.xlu0
    %v628 = vpop.trf.xlu0
    %v629 = vpop.trf.xlu0
    %v630 = vpop.trf.xlu0
    %631 = vst.msk [vmem:[#allocation2] sm:$0xff] %vm59, %v615
    %632 = vst.msk [vmem:[#allocation2 + $0x8] sm:$0xff] %vm59, %v616
    %633 = vst.msk [vmem:[#allocation2 + $0x10] sm:$0xff] %vm59, %v617
    %634 = vst.msk [vmem:[#allocation2 + $0x18] sm:$0xff] %vm59, %v618
    %635 = vst.msk [vmem:[#allocation2 + $0x20] sm:$0xff] %vm59, %v619
    %636 = vst.msk [vmem:[#allocation2 + $0x28] sm:$0xff] %vm59, %v620
    %637 = vst.msk [vmem:[#allocation2 + $0x30] sm:$0xff] %vm59, %v621
    %638 = vst.msk [vmem:[#allocation2 + $0x38] sm:$0xff] %vm59, %v622
    %639 = vst.msk [vmem:[#allocation2 + $0x40] sm:$0xff] %vm59, %v623
    %640 = vst.msk [vmem:[#allocation2 + $0x48] sm:$0xff] %vm59, %v624
    %641 = vst.msk [vmem:[#allocation2 + $0x50] sm:$0xff] %vm59, %v625
    %642 = vst.msk [vmem:[#allocation2 + $0x58] sm:$0xff] %vm59, %v626
    %643 = vst.msk [vmem:[#allocation2 + $0x60] sm:$0xff] %vm59, %v627
    %644 = vst.msk [vmem:[#allocation2 + $0x68] sm:$0xff] %vm59, %v628
    %645 = vst.msk [vmem:[#allocation2 + $0x70] sm:$0xff] %vm59, %v629
    %646 = vst.msk [vmem:[#allocation2 + $0x78] sm:$0xff] %vm59, %v630
    // Predicated region
    $region14: #{uncertainty_net.1} parent=1 // pred_check
      _
    $region15: #{uncertainty_net.1} parent=1 // pred_check_branch
      %648 = sbr.rel (0) target = $region17
    $region16: #{uncertainty_net.1} parent=1 // pred_region
      %s650 = ssub.s32 2048, 128
      %651 = vsyncadd [#allocation3], %s650
      %s652 = sshll.u32 [#allocation2], 4
      %s653 = int_to_ptr.vmem [resolvable:$true] %s652
      %658 = dma.vmem_to_hbm [thread:$0]  %s653, 128, %s3, [#allocation3], 128, 128, 8
    $region17: #{uncertainty_net.1} parent=1 // pred_fallthru
      _
    // Predicated region
    $region18: #{uncertainty_net.1} parent=1 // pred_check
      _
    $region19: #{uncertainty_net.1} parent=1 // pred_check_branch
      %660 = sbr.rel (0) target = $region21
    $region20: #{uncertainty_net.1} parent=1 // pred_region
      %661 = dma.done [#allocation3], 2048
    $region21: #{uncertainty_net.1} parent=1 // pred_fallthru
      _
    %662 = vsyncpa [#allocation3], 1

</llo_original>
